<compile_context>
chip_gen: v7x
topology: tpu7x:2x2x1
jax: 0.10.0
libtpu: 0.0.40
codegen_flags: <defaults>
</compile_context>

<pallas_src>
import functools

import jax
import jax.numpy as jnp
from jax.experimental import pallas as pl
from jax.experimental.pallas import tpu as pltpu


def _round_up(x, m):
    return ((x + m - 1) // m) * m


def _make_mlp_kernel(num_layers):
    """Kernel: full MLP tower + predict layer + sigmoid, transposed layout."""

    def kernel(xu_ref, xv_ref, *refs):
        # refs = (W0_u, W0_v, b0, W1, b1, ..., W_{L-1}, b_{L-1},
        #         w_pred_col, b_pred, out_ref)
        out_ref = refs[-1]
        params = refs[:-1]

        w0u = params[0][...]            # (h0, emb)  bf16
        w0v = params[1][...]            # (h0, emb)  bf16
        b0 = params[2][...]             # (h0, 1)    f32

        # Layer 0 on the split concat: W0 @ [u; v] == W0_u @ u + W0_v @ v.
        h = jnp.dot(w0u, xu_ref[...], preferred_element_type=jnp.float32)
        h = h + jnp.dot(w0v, xv_ref[...], preferred_element_type=jnp.float32)
        h = jnp.maximum(h + b0, 0.0)    # f32 (h0, TILE_B)

        idx = 3
        for _ in range(1, num_layers):
            w = params[idx][...]        # (out, in) bf16
            b = params[idx + 1][...]    # (out, 1)  f32
            idx += 2
            h = jnp.dot(w, h.astype(w.dtype),
                        preferred_element_type=jnp.float32)
            h = jnp.maximum(h + b, 0.0)

        # Predict layer: (factor_num -> 1) as VPU multiply + sublane reduce,
        # giving a lane-dense (1, TILE_B) row (avoids a 32x1 MXU matmul and a
        # width-1 masked store).
        w_pred = params[idx][...]       # (factor_num, 1) f32
        b_pred = params[idx + 1][...]   # (1, 1)          f32
        logits = jnp.sum(h * w_pred, axis=0, keepdims=True) + b_pred

        e = jnp.exp(-logits)                         # EUP
        p = pl.reciprocal(1.0 + e, approx=True)      # EUP
        out_ref[...] = jnp.clip(p, 0.0, 1.0)

    return kernel


@functools.partial(jax.jit, static_argnames=("num_layers",))
def mlp_forward(user, item, embed_user, embed_item, mlp_ws, mlp_bs, w_pred,
                b_pred, *, num_layers):
    batch = user.shape[0]
    emb = embed_user.shape[1]           # factor_num * 2**(num_layers - 1)

    # ---- batch tiling: lane axis must be a multiple of 128 ----------------
    MAX_TILE_B = 512
    if batch <= MAX_TILE_B:
        tile_b = _round_up(batch, 128)
        b_pad = tile_b
    else:
        tile_b = MAX_TILE_B
        b_pad = _round_up(batch, tile_b)
    grid = (b_pad // tile_b,)

    # ---- glue: embedding gather, pad, transpose to (feat, batch), bf16 ----
    def _prep(table, idx):
        g = jnp.take(table, idx, axis=0)                   # (B, emb) f32
        g = jnp.pad(g, ((0, b_pad - batch), (0, 0)))
        return g.T.astype(jnp.bfloat16)                    # (emb, B_pad)

    xu_t = _prep(embed_user, user)
    xv_t = _prep(embed_item, item)

    # ---- parameter prep: (out, in) layout, bf16 weights, f32 bias ---------
    w0 = mlp_ws[0].astype(jnp.bfloat16)                    # (h0, 2*emb)
    flat_params = [
        w0[:, :emb],                                       # W0_u
        w0[:, emb:],                                       # W0_v
        mlp_bs[0].reshape(-1, 1).astype(jnp.float32),
    ]
    for i in range(1, num_layers):
        flat_params.append(mlp_ws[i].astype(jnp.bfloat16))
        flat_params.append(mlp_bs[i].reshape(-1, 1).astype(jnp.float32))
    flat_params.append(w_pred.reshape(-1, 1).astype(jnp.float32))   # column
    flat_params.append(b_pred.reshape(1, 1).astype(jnp.float32))

    kernel = _make_mlp_kernel(num_layers)

    in_specs = [
        pl.BlockSpec((emb, tile_b), lambda i: (0, i)),     # u^T tile
        pl.BlockSpec((emb, tile_b), lambda i: (0, i)),     # v^T tile
    ] + [
        # Full-extent blocks with constant index -> weights stay VMEM-resident
        # across the whole batch grid.
        pl.BlockSpec(p.shape, lambda i: (0, 0)) for p in flat_params
    ]

    out = pl.pallas_call(
        kernel,
        out_shape=jax.ShapeDtypeStruct((1, b_pad), jnp.float32),
        grid_spec=pltpu.PrefetchScalarGridSpec(
            num_scalar_prefetch=0,
            grid=grid,
            in_specs=in_specs,
            out_specs=pl.BlockSpec((1, tile_b), lambda i: (0, i)),
        ),
        compiler_params=pltpu.CompilerParams(
            dimension_semantics=("parallel",),
            vmem_limit_bytes=32 * 1024 * 1024,
        ),
    )(xu_t, xv_t, *flat_params)

    return out.reshape(-1)[:batch]      # prediction.view(-1)


def init_params(key, user_num, item_num, factor_num, num_layers):
    """Deterministic parameter init mirroring MLP._init_weight_().

    Weights are stored in the PyTorch nn.Linear convention (out, in)."""
    keys = jax.random.split(key, 3 + num_layers)

    emb_dim = factor_num * 2 ** (num_layers - 1)
    embed_user = 0.01 * jax.random.normal(keys[0], (user_num, emb_dim),
                                          dtype=jnp.float32)
    embed_item = 0.01 * jax.random.normal(keys[1], (item_num, emb_dim),
                                          dtype=jnp.float32)

    mlp_ws, mlp_bs = [], []
    for i in range(num_layers):
        in_size = factor_num * 2 ** (num_layers - i)
        out_size = in_size // 2
        w = jax.random.normal(keys[2 + i], (out_size, in_size),
                              dtype=jnp.float32)      # nn.init.normal_ (std=1)
        b = jnp.zeros((out_size,), dtype=jnp.float32)
        mlp_ws.append(w)
        mlp_bs.append(b)

    w_pred = 0.01 * jax.random.normal(keys[2 + num_layers],
                                      (1, factor_num), dtype=jnp.float32)
    b_pred = jnp.zeros((1,), dtype=jnp.float32)

    return embed_user, embed_item, mlp_ws, mlp_bs, w_pred, b_pred


def mlp_reference(user, item, embed_user, embed_item, mlp_ws, mlp_bs, w_pred,
                  b_pred):
    """Pure-JAX f32 reference matching the PyTorch forward (eval mode)."""
    u = embed_user[user]
    v = embed_item[item]
    x = jnp.concatenate([u, v], axis=-1)
    for w, b in zip(mlp_ws, mlp_bs):
        x = jnp.maximum(x @ w.T + b, 0.0)
    logits = x @ w_pred.T + b_pred
    return jax.nn.sigmoid(logits).reshape(-1)


if __name__ == "__main__":
    user_num = 16
    item_num = 16
    factor_num = 32
    num_layers = 3      # concat dim = 32 * 2**3 = 256 -> 128 -> 64 -> 32 -> 1
    batch = 8

    key = jax.random.PRNGKey(0)
    pkey, ukey, ikey = jax.random.split(key, 3)

    (embed_user, embed_item, mlp_ws, mlp_bs,
     w_pred, b_pred) = init_params(pkey, user_num, item_num,
                                   factor_num, num_layers)

    user = jax.random.randint(ukey, (batch,), 0, user_num, dtype=jnp.int32)
    item = jax.random.randint(ikey, (batch,), 0, item_num, dtype=jnp.int32)

    pred = mlp_forward(user, item, embed_user, embed_item,
                       tuple(mlp_ws), tuple(mlp_bs), w_pred, b_pred,
                       num_layers=num_layers)
    pred = jax.block_until_ready(pred)

    ref = mlp_reference(user, item, embed_user, embed_item,
                        mlp_ws, mlp_bs, w_pred, b_pred)

    assert pred.shape == (batch,)
    assert bool(jnp.all((pred >= 0.0) & (pred <= 1.0)))
    assert bool(jnp.all(jnp.abs(pred - ref) < 3e-2)), (pred, ref)
    print("KERNEL_OK")
</pallas_src>

<mosaic_0001>
module attributes {stable_mosaic.version = 11 : i64} {
  func.func @kernel(%arg0: i32, %arg1: memref<128x128xbf16, #tpu.memory_space<vmem>>, %arg2: memref<128x128xbf16, #tpu.memory_space<vmem>>, %arg3: memref<128x128xbf16, #tpu.memory_space<vmem>>, %arg4: memref<128x128xbf16, #tpu.memory_space<vmem>>, %arg5: memref<128x1xf32, #tpu.memory_space<vmem>>, %arg6: memref<64x128xbf16, #tpu.memory_space<vmem>>, %arg7: memref<64x1xf32, #tpu.memory_space<vmem>>, %arg8: memref<32x64xbf16, #tpu.memory_space<vmem>>, %arg9: memref<32x1xf32, #tpu.memory_space<vmem>>, %arg10: memref<32x1xf32, #tpu.memory_space<vmem>>, %arg11: memref<1x1xf32, #tpu.memory_space<vmem>>, %arg12: memref<1x128xf32, #tpu.memory_space<vmem>>) attributes {dimension_semantics = [#tpu.dimension_semantics<parallel>], iteration_bounds = array<i64: 1>, scalar_prefetch = 0 : i64, scratch_operands = 0 : i64, tpu.core_type = #tpu.core_type<tc>, window_params = [{transform_indices = @transform_0, window_bounds = array<i64: 128, 128>}, {transform_indices = @transform_1, window_bounds = array<i64: 128, 128>}, {pipeline_mode = #tpu.pipeline_mode<synchronous>, transform_indices = @transform_2, window_bounds = array<i64: 128, 128>}, {pipeline_mode = #tpu.pipeline_mode<synchronous>, transform_indices = @transform_3, window_bounds = array<i64: 128, 128>}, {pipeline_mode = #tpu.pipeline_mode<synchronous>, transform_indices = @transform_4, window_bounds = array<i64: 128, 1>}, {pipeline_mode = #tpu.pipeline_mode<synchronous>, transform_indices = @transform_5, window_bounds = array<i64: 64, 128>}, {pipeline_mode = #tpu.pipeline_mode<synchronous>, transform_indices = @transform_6, window_bounds = array<i64: 64, 1>}, {pipeline_mode = #tpu.pipeline_mode<synchronous>, transform_indices = @transform_7, window_bounds = array<i64: 32, 64>}, {pipeline_mode = #tpu.pipeline_mode<synchronous>, transform_indices = @transform_8, window_bounds = array<i64: 32, 1>}, {pipeline_mode = #tpu.pipeline_mode<synchronous>, transform_indices = @transform_9, window_bounds = array<i64: 32, 1>}, {pipeline_mode = #tpu.pipeline_mode<synchronous>, transform_indices = @transform_10, window_bounds = array<i64: 1, 1>}, {transform_indices = @transform_11, window_bounds = array<i64: 1, 128>}]} {
    %c0 = arith.constant 0 : index
    %c0_0 = arith.constant 0 : index
    %0 = vector.load %arg3[%c0, %c0_0] : memref<128x128xbf16, #tpu.memory_space<vmem>>, vector<128x128xbf16>
    %c0_1 = arith.constant 0 : index
    %c0_2 = arith.constant 0 : index
    %1 = vector.load %arg4[%c0_1, %c0_2] : memref<128x128xbf16, #tpu.memory_space<vmem>>, vector<128x128xbf16>
    %c0_3 = arith.constant 0 : index
    %c0_4 = arith.constant 0 : index
    %2 = vector.load %arg5[%c0_3, %c0_4] : memref<128x1xf32, #tpu.memory_space<vmem>>, vector<128x1xf32>
    %c0_5 = arith.constant 0 : index
    %c0_6 = arith.constant 0 : index
    %3 = vector.load %arg1[%c0_5, %c0_6] : memref<128x128xbf16, #tpu.memory_space<vmem>>, vector<128x128xbf16>
    %cst = arith.constant dense<0.000000e+00> : vector<128x128xf32>
    %4 = tpu.matmul %0, %3, %cst {dimension_numbers = #tpu.dot_dimension_numbers<[1], [0], [0], [1], [0, 0, 1, 1], [], []>} : vector<128x128xbf16>, vector<128x128xbf16>, vector<128x128xf32> -> vector<128x128xf32>
    %c0_7 = arith.constant 0 : index
    %c0_8 = arith.constant 0 : index
    %5 = vector.load %arg2[%c0_7, %c0_8] : memref<128x128xbf16, #tpu.memory_space<vmem>>, vector<128x128xbf16>
    %cst_9 = arith.constant dense<0.000000e+00> : vector<128x128xf32>
    %6 = tpu.matmul %1, %5, %cst_9 {dimension_numbers = #tpu.dot_dimension_numbers<[1], [0], [0], [1], [0, 0, 1, 1], [], []>} : vector<128x128xbf16>, vector<128x128xbf16>, vector<128x128xf32> -> vector<128x128xf32>
    %7 = arith.addf %4, %6 : vector<128x128xf32>
    %8 = vector.broadcast %2 : vector<128x1xf32> to vector<128x128xf32>
    %9 = arith.addf %7, %8 : vector<128x128xf32>
    %cst_10 = arith.constant 0.000000e+00 : f32
    %10 = vector.broadcast %cst_10 : f32 to vector<128x128xf32>
    %11 = arith.maximumf %9, %10 : vector<128x128xf32>
    %c0_11 = arith.constant 0 : index
    %c0_12 = arith.constant 0 : index
    %12 = vector.load %arg6[%c0_11, %c0_12] : memref<64x128xbf16, #tpu.memory_space<vmem>>, vector<64x128xbf16>
    %c0_13 = arith.constant 0 : index
    %c0_14 = arith.constant 0 : index
    %13 = vector.load %arg7[%c0_13, %c0_14] : memref<64x1xf32, #tpu.memory_space<vmem>>, vector<64x1xf32>
    %14 = arith.truncf %11 : vector<128x128xf32> to vector<128x128xbf16>
    %cst_15 = arith.constant dense<0.000000e+00> : vector<64x128xf32>
    %15 = tpu.matmul %12, %14, %cst_15 {dimension_numbers = #tpu.dot_dimension_numbers<[1], [0], [0], [1], [0, 0, 1, 1], [], []>} : vector<64x128xbf16>, vector<128x128xbf16>, vector<64x128xf32> -> vector<64x128xf32>
    %16 = vector.broadcast %13 : vector<64x1xf32> to vector<64x128xf32>
    %17 = arith.addf %15, %16 : vector<64x128xf32>
    %cst_16 = arith.constant 0.000000e+00 : f32
    %18 = vector.broadcast %cst_16 : f32 to vector<64x128xf32>
    %19 = arith.maximumf %17, %18 : vector<64x128xf32>
    %c0_17 = arith.constant 0 : index
    %c0_18 = arith.constant 0 : index
    %20 = vector.load %arg8[%c0_17, %c0_18] : memref<32x64xbf16, #tpu.memory_space<vmem>>, vector<32x64xbf16>
    %c0_19 = arith.constant 0 : index
    %c0_20 = arith.constant 0 : index
    %21 = vector.load %arg9[%c0_19, %c0_20] : memref<32x1xf32, #tpu.memory_space<vmem>>, vector<32x1xf32>
    %22 = arith.truncf %19 : vector<64x128xf32> to vector<64x128xbf16>
    %cst_21 = arith.constant dense<0.000000e+00> : vector<32x128xf32>
    %23 = tpu.matmul %20, %22, %cst_21 {dimension_numbers = #tpu.dot_dimension_numbers<[1], [0], [0], [1], [0, 0, 1, 1], [], []>} : vector<32x64xbf16>, vector<64x128xbf16>, vector<32x128xf32> -> vector<32x128xf32>
    %24 = vector.broadcast %21 : vector<32x1xf32> to vector<32x128xf32>
    %25 = arith.addf %23, %24 : vector<32x128xf32>
    %cst_22 = arith.constant 0.000000e+00 : f32
    %26 = vector.broadcast %cst_22 : f32 to vector<32x128xf32>
    %27 = arith.maximumf %25, %26 : vector<32x128xf32>
    %c0_23 = arith.constant 0 : index
    %c0_24 = arith.constant 0 : index
    %28 = vector.load %arg10[%c0_23, %c0_24] : memref<32x1xf32, #tpu.memory_space<vmem>>, vector<32x1xf32>
    %c0_25 = arith.constant 0 : index
    %c0_26 = arith.constant 0 : index
    %29 = vector.load %arg11[%c0_25, %c0_26] : memref<1x1xf32, #tpu.memory_space<vmem>>, vector<1x1xf32>
    %30 = vector.broadcast %28 : vector<32x1xf32> to vector<32x128xf32>
    %31 = arith.mulf %27, %30 : vector<32x128xf32>
    %cst_27 = arith.constant dense<0.000000e+00> : vector<128xf32>
    %32 = vector.multi_reduction <add>, %31, %cst_27 [0] : vector<32x128xf32> to vector<128xf32>
    %33 = vector.shape_cast %32 : vector<128xf32> to vector<1x128xf32>
    %34 = vector.broadcast %29 : vector<1x1xf32> to vector<1x128xf32>
    %35 = arith.addf %33, %34 : vector<1x128xf32>
    %cst_28 = arith.constant 0.000000e+00 : f32
    %36 = vector.broadcast %cst_28 : f32 to vector<1x128xf32>
    %37 = arith.subf %36, %35 : vector<1x128xf32>
    %38 = math.exp %37 : vector<1x128xf32>
    %cst_29 = arith.constant 1.000000e+00 : f32
    %39 = vector.broadcast %cst_29 : f32 to vector<1x128xf32>
    %40 = arith.addf %39, %38 : vector<1x128xf32>
    %41 = tpu.reciprocal %40 {approx = true} : vector<1x128xf32> -> vector<1x128xf32>
    %cst_30 = arith.constant 0.000000e+00 : f32
    %cst_31 = arith.constant 1.000000e+00 : f32
    %42 = vector.broadcast %cst_30 : f32 to vector<1x128xf32>
    %43 = arith.maximumf %42, %41 : vector<1x128xf32>
    %44 = vector.broadcast %cst_31 : f32 to vector<1x128xf32>
    %45 = arith.minimumf %44, %43 : vector<1x128xf32>
    %c0_32 = arith.constant 0 : index
    %c0_33 = arith.constant 0 : index
    %46 = vector.load %arg12[%c0_32, %c0_33] : memref<1x128xf32, #tpu.memory_space<vmem>>, vector<1x128xf32>
    tpu.vector_store %arg12[%c0_32, %c0_33], %45 {strides = array<i32>} : memref<1x128xf32, #tpu.memory_space<vmem>>, vector<1x128xf32>,
    return
  }
  func.func @transform_0(%arg0: i32) -> (i32, i32) {
    %c0_i32 = arith.constant 0 : i32
    %c0_i32_0 = arith.constant 0 : i32
    return %c0_i32, %arg0 : i32, i32
  }
  func.func @transform_1(%arg0: i32) -> (i32, i32) {
    %c0_i32 = arith.constant 0 : i32
    %c0_i32_0 = arith.constant 0 : i32
    return %c0_i32, %arg0 : i32, i32
  }
  func.func @transform_2(%arg0: i32) -> (i32, i32) {
    %c0_i32 = arith.constant 0 : i32
    %c0_i32_0 = arith.constant 0 : i32
    %c0_i32_1 = arith.constant 0 : i32
    return %c0_i32, %c0_i32_0 : i32, i32
  }
  func.func @transform_3(%arg0: i32) -> (i32, i32) {
    %c0_i32 = arith.constant 0 : i32
    %c0_i32_0 = arith.constant 0 : i32
    %c0_i32_1 = arith.constant 0 : i32
    return %c0_i32, %c0_i32_0 : i32, i32
  }
  func.func @transform_4(%arg0: i32) -> (i32, i32) {
    %c0_i32 = arith.constant 0 : i32
    %c0_i32_0 = arith.constant 0 : i32
    %c0_i32_1 = arith.constant 0 : i32
    return %c0_i32, %c0_i32_0 : i32, i32
  }
  func.func @transform_5(%arg0: i32) -> (i32, i32) {
    %c0_i32 = arith.constant 0 : i32
    %c0_i32_0 = arith.constant 0 : i32
    %c0_i32_1 = arith.constant 0 : i32
    return %c0_i32, %c0_i32_0 : i32, i32
  }
  func.func @transform_6(%arg0: i32) -> (i32, i32) {
    %c0_i32 = arith.constant 0 : i32
    %c0_i32_0 = arith.constant 0 : i32
    %c0_i32_1 = arith.constant 0 : i32
    return %c0_i32, %c0_i32_0 : i32, i32
  }
  func.func @transform_7(%arg0: i32) -> (i32, i32) {
    %c0_i32 = arith.constant 0 : i32
    %c0_i32_0 = arith.constant 0 : i32
    %c0_i32_1 = arith.constant 0 : i32
    return %c0_i32, %c0_i32_0 : i32, i32
  }
  func.func @transform_8(%arg0: i32) -> (i32, i32) {
    %c0_i32 = arith.constant 0 : i32
    %c0_i32_0 = arith.constant 0 : i32
    %c0_i32_1 = arith.constant 0 : i32
    return %c0_i32, %c0_i32_0 : i32, i32
  }
  func.func @transform_9(%arg0: i32) -> (i32, i32) {
    %c0_i32 = arith.constant 0 : i32
    %c0_i32_0 = arith.constant 0 : i32
    %c0_i32_1 = arith.constant 0 : i32
    return %c0_i32, %c0_i32_0 : i32, i32
  }
  func.func @transform_10(%arg0: i32) -> (i32, i32) {
    %c0_i32 = arith.constant 0 : i32
    %c0_i32_0 = arith.constant 0 : i32
    %c0_i32_1 = arith.constant 0 : i32
    return %c0_i32, %c0_i32_0 : i32, i32
  }
  func.func @transform_11(%arg0: i32) -> (i32, i32) {
    %c0_i32 = arith.constant 0 : i32
    %c0_i32_0 = arith.constant 0 : i32
    return %c0_i32, %arg0 : i32, i32
  }
}

</mosaic_0001>

<llo_original>
// kernel: mlp_forward.1
$region0: #{mlp_forward.1}
  #allocation0 [shape = 'u32[]', space=smem, size = 0x4, offset = 0x4, fixed_abs, tag = 'smem constant byte address 0x4 - core index']
  #allocation1 [shape = 'u32[144,128]{1,0:T(1,128)}', space=vmem, size = 0x12000, scoped, tag = 'internal scratch']
  #allocation2 [shape = 'f32[1,1]{1,0:T(1,128)S(1)}', space=vmem, size = 0x200, scoped, tag = 'scoped memory for mlp_forward.1']
  %s0 = inlined_call_operand.vmem [shape: bf16[128,128], index: 0, kind: input, shape index: {}]
  %s1 = inlined_call_operand.vmem [shape: bf16[128,128], index: 1, kind: input, shape index: {}]
  %s2 = inlined_call_operand.vmem [shape: bf16[128,128], index: 2, kind: input, shape index: {}]
  %s3 = inlined_call_operand.vmem [shape: bf16[128,128], index: 3, kind: input, shape index: {}]
  %s4 = inlined_call_operand.vmem [shape: f32[128,1], index: 4, kind: input, shape index: {}]
  %s5 = inlined_call_operand.vmem [shape: bf16[64,128], index: 5, kind: input, shape index: {}]
  %s6 = inlined_call_operand.vmem [shape: f32[64,1], index: 6, kind: input, shape index: {}]
  %s7 = inlined_call_operand.vmem [shape: bf16[32,64], index: 7, kind: input, shape index: {}]
  %s8 = inlined_call_operand.vmem [shape: f32[32,1], index: 8, kind: input, shape index: {}]
  %s9 = inlined_call_operand.vmem [shape: f32[32,1], index: 9, kind: input, shape index: {}]
  %s10 = inlined_call_operand.<no memory space> [shape: f32[1,1], index: 10, kind: input, shape index: {}]
  %s11 = inlined_call_operand.vmem [shape: f32[1,128], index: 11, kind: output, shape index: {}]
  %s12 = sld [smem:[#allocation0]]
  $region54: #{mlp_forward.1} parent=0
    _
  %s14 = ssub.s32 1, %s12
  %s15 = scalar_select 0, %s14, %s12
  %v16 = vstv %s10
  %17 = vst [vmem:[#allocation2] sm:$0x1] %v16
  // Predicated region
  $region2: #{mlp_forward.1} parent=0 // pred_check
    _
  $region3: #{mlp_forward.1} parent=0 // pred_check_branch
    %19 = sbr.rel (0) target = $region5
  $region4: #{mlp_forward.1} parent=0 // pred_region
    _
  $region5: #{mlp_forward.1} parent=0 // pred_fallthru
    _
  // Predicated region
  $region6: #{mlp_forward.1} parent=0 // pred_check
    _
  $region7: #{mlp_forward.1} parent=0 // pred_check_branch
    %21 = sbr.rel (0) target = $region9
  $region8: #{mlp_forward.1} parent=0 // pred_region
    _
  $region9: #{mlp_forward.1} parent=0 // pred_fallthru
    _
  // Predicated region
  $region10: #{mlp_forward.1} parent=0 // pred_check
    _
  $region11: #{mlp_forward.1} parent=0 // pred_check_branch
    %23 = sbr.rel (0) target = $region13
  $region12: #{mlp_forward.1} parent=0 // pred_region
    _
  $region13: #{mlp_forward.1} parent=0 // pred_fallthru
    _
  // Predicated region
  $region14: #{mlp_forward.1} parent=0 // pred_check
    _
  $region15: #{mlp_forward.1} parent=0 // pred_check_branch
    %25 = sbr.rel (0) target = $region17
  $region16: #{mlp_forward.1} parent=0 // pred_region
    _
  $region17: #{mlp_forward.1} parent=0 // pred_fallthru
    _
  // Predicated region
  $region18: #{mlp_forward.1} parent=0 // pred_check
    _
  $region19: #{mlp_forward.1} parent=0 // pred_check_branch
    %27 = sbr.rel (0) target = $region21
  $region20: #{mlp_forward.1} parent=0 // pred_region
    _
  $region21: #{mlp_forward.1} parent=0 // pred_fallthru
    _
  // Predicated region
  $region22: #{mlp_forward.1} parent=0 // pred_check
    _
  $region23: #{mlp_forward.1} parent=0 // pred_check_branch
    %29 = sbr.rel (0) target = $region25
  $region24: #{mlp_forward.1} parent=0 // pred_region
    _
  $region25: #{mlp_forward.1} parent=0 // pred_fallthru
    _
  // Predicated region
  $region26: #{mlp_forward.1} parent=0 // pred_check
    _
  $region27: #{mlp_forward.1} parent=0 // pred_check_branch
    %31 = sbr.rel (0) target = $region29
  $region28: #{mlp_forward.1} parent=0 // pred_region
    _
  $region29: #{mlp_forward.1} parent=0 // pred_fallthru
    _
  // Predicated region
  $region30: #{mlp_forward.1} parent=0 // pred_check
    _
  $region31: #{mlp_forward.1} parent=0 // pred_check_branch
    %33 = sbr.rel (0) target = $region33
  $region32: #{mlp_forward.1} parent=0 // pred_region
    _
  $region33: #{mlp_forward.1} parent=0 // pred_fallthru
    _
  // Predicated region
  $region34: #{mlp_forward.1} parent=0 // pred_check
    _
  $region35: #{mlp_forward.1} parent=0 // pred_check_branch
    %35 = sbr.rel (0) target = $region37
  $region36: #{mlp_forward.1} parent=0 // pred_region
    _
  $region37: #{mlp_forward.1} parent=0 // pred_fallthru
    _
  // Predicated region
  $region38: #{mlp_forward.1} parent=0 // pred_check
    _
  $region39: #{mlp_forward.1} parent=0 // pred_check_branch
    %37 = sbr.rel (0) target = $region41
  $region40: #{mlp_forward.1} parent=0 // pred_region
    _
  $region41: #{mlp_forward.1} parent=0 // pred_fallthru
    _
  // Predicated region
  $region42: #{mlp_forward.1} parent=0 // pred_check
    _
  $region43: #{mlp_forward.1} parent=0 // pred_check_branch
    %39 = sbr.rel (0) target = $region45
  $region44: #{mlp_forward.1} parent=0 // pred_region
    _
  $region45: #{mlp_forward.1} parent=0 // pred_fallthru
    _
  %v41 = vld [vmem:[%s2] sm:$0xf]
  %v42 = vld [vmem:[%s2 + $0x4] sm:$0xf]
  %v43 = vld [vmem:[%s2 + $0x8] sm:$0xf]
  %v44 = vld [vmem:[%s2 + $0xc] sm:$0xf]
  %v45 = vld [vmem:[%s2 + $0x10] sm:$0xf]
  %v46 = vld [vmem:[%s2 + $0x14] sm:$0xf]
  %v47 = vld [vmem:[%s2 + $0x18] sm:$0xf]
  %v48 = vld [vmem:[%s2 + $0x1c] sm:$0xf]
  %v49 = vld [vmem:[%s2 + $0x20] sm:$0xf]
  %v50 = vld [vmem:[%s2 + $0x24] sm:$0xf]
  %v51 = vld [vmem:[%s2 + $0x28] sm:$0xf]
  %v52 = vld [vmem:[%s2 + $0x2c] sm:$0xf]
  %v53 = vld [vmem:[%s2 + $0x30] sm:$0xf]
  %v54 = vld [vmem:[%s2 + $0x34] sm:$0xf]
  %v55 = vld [vmem:[%s2 + $0x38] sm:$0xf]
  %v56 = vld [vmem:[%s2 + $0x3c] sm:$0xf]
  %v57 = vld [vmem:[%s3] sm:$0xf]
  %v58 = vld [vmem:[%s3 + $0x4] sm:$0xf]
  %v59 = vld [vmem:[%s3 + $0x8] sm:$0xf]
  %v60 = vld [vmem:[%s3 + $0xc] sm:$0xf]
  %v61 = vld [vmem:[%s3 + $0x10] sm:$0xf]
  %v62 = vld [vmem:[%s3 + $0x14] sm:$0xf]
  %v63 = vld [vmem:[%s3 + $0x18] sm:$0xf]
  %v64 = vld [vmem:[%s3 + $0x1c] sm:$0xf]
  %v65 = vld [vmem:[%s3 + $0x20] sm:$0xf]
  %v66 = vld [vmem:[%s3 + $0x24] sm:$0xf]
  %v67 = vld [vmem:[%s3 + $0x28] sm:$0xf]
  %v68 = vld [vmem:[%s3 + $0x2c] sm:$0xf]
  %v69 = vld [vmem:[%s3 + $0x30] sm:$0xf]
  %v70 = vld [vmem:[%s3 + $0x34] sm:$0xf]
  %v71 = vld [vmem:[%s3 + $0x38] sm:$0xf]
  %v72 = vld [vmem:[%s3 + $0x3c] sm:$0xf]
  %v73 = vld [vmem:[%s4] sm:$0xff]
  %v74 = vld [vmem:[%s4 + $0x8] sm:$0xff]
  %v75 = vld [vmem:[%s4 + $0x10] sm:$0xff]
  %v76 = vld [vmem:[%s4 + $0x18] sm:$0xff]
  %v77 = vld [vmem:[%s4 + $0x20] sm:$0xff]
  %v78 = vld [vmem:[%s4 + $0x28] sm:$0xff]
  %v79 = vld [vmem:[%s4 + $0x30] sm:$0xff]
  %v80 = vld [vmem:[%s4 + $0x38] sm:$0xff]
  %v81 = vld [vmem:[%s4 + $0x40] sm:$0xff]
  %v82 = vld [vmem:[%s4 + $0x48] sm:$0xff]
  %v83 = vld [vmem:[%s4 + $0x50] sm:$0xff]
  %v84 = vld [vmem:[%s4 + $0x58] sm:$0xff]
  %v85 = vld [vmem:[%s4 + $0x60] sm:$0xff]
  %v86 = vld [vmem:[%s4 + $0x68] sm:$0xff]
  %v87 = vld [vmem:[%s4 + $0x70] sm:$0xff]
  %v88 = vld [vmem:[%s4 + $0x78] sm:$0xff]
  %v89 = vld [vmem:[%s0] sm:$0xf]
  %v90 = vld [vmem:[%s0 + $0x4] sm:$0xf]
  %v91 = vld [vmem:[%s0 + $0x8] sm:$0xf]
  %v92 = vld [vmem:[%s0 + $0xc] sm:$0xf]
  %v93 = vld [vmem:[%s0 + $0x10] sm:$0xf]
  %v94 = vld [vmem:[%s0 + $0x14] sm:$0xf]
  %v95 = vld [vmem:[%s0 + $0x18] sm:$0xf]
  %v96 = vld [vmem:[%s0 + $0x1c] sm:$0xf]
  %v97 = vld [vmem:[%s0 + $0x20] sm:$0xf]
  %v98 = vld [vmem:[%s0 + $0x24] sm:$0xf]
  %v99 = vld [vmem:[%s0 + $0x28] sm:$0xf]
  %v100 = vld [vmem:[%s0 + $0x2c] sm:$0xf]
  %v101 = vld [vmem:[%s0 + $0x30] sm:$0xf]
  %v102 = vld [vmem:[%s0 + $0x34] sm:$0xf]
  %v103 = vld [vmem:[%s0 + $0x38] sm:$0xf]
  %v104 = vld [vmem:[%s0 + $0x3c] sm:$0xf]
  %v105 = vld [vmem:[%s1] sm:$0xf]
  %v106 = vld [vmem:[%s1 + $0x4] sm:$0xf]
  %v107 = vld [vmem:[%s1 + $0x8] sm:$0xf]
  %v108 = vld [vmem:[%s1 + $0xc] sm:$0xf]
  %v109 = vld [vmem:[%s1 + $0x10] sm:$0xf]
  %v110 = vld [vmem:[%s1 + $0x14] sm:$0xf]
  %v111 = vld [vmem:[%s1 + $0x18] sm:$0xf]
  %v112 = vld [vmem:[%s1 + $0x1c] sm:$0xf]
  %v113 = vld [vmem:[%s1 + $0x20] sm:$0xf]
  %v114 = vld [vmem:[%s1 + $0x24] sm:$0xf]
  %v115 = vld [vmem:[%s1 + $0x28] sm:$0xf]
  %v116 = vld [vmem:[%s1 + $0x2c] sm:$0xf]
  %v117 = vld [vmem:[%s1 + $0x30] sm:$0xf]
  %v118 = vld [vmem:[%s1 + $0x34] sm:$0xf]
  %v119 = vld [vmem:[%s1 + $0x38] sm:$0xf]
  %v120 = vld [vmem:[%s1 + $0x3c] sm:$0xf]
  %v137 = vunpack.c.l.b16 %v57
  %v138 = vunpack.c.l.b16 %v58
  %v139 = vunpack.c.l.b16 %v59
  %v140 = vunpack.c.l.b16 %v60
  %v141 = vunpack.c.l.b16 %v61
  %v142 = vunpack.c.l.b16 %v62
  %v143 = vunpack.c.l.b16 %v63
  %v144 = vunpack.c.l.b16 %v64
  %v145 = vunpack.c.l.b16 %v65
  %v146 = vunpack.c.l.b16 %v66
  %v147 = vunpack.c.l.b16 %v67
  %v148 = vunpack.c.l.b16 %v68
  %v149 = vunpack.c.l.b16 %v69
  %v150 = vunpack.c.l.b16 %v70
  %v151 = vunpack.c.l.b16 %v71
  %v152 = vunpack.c.l.b16 %v72
  %v153 = vpack.c.b16 %v138, %v137
  %v154 = vpack.c.b16 %v140, %v139
  %v155 = vpack.c.b16 %v142, %v141
  %v156 = vpack.c.b16 %v144, %v143
  %v157 = vpack.c.b16 %v146, %v145
  %v158 = vpack.c.b16 %v148, %v147
  %v159 = vpack.c.b16 %v150, %v149
  %v160 = vpack.c.b16 %v152, %v151
  %v185 = vunpack.c.l.b16 %v105
  %v186 = vunpack.c.l.b16 %v106
  %v187 = vunpack.c.l.b16 %v107
  %v188 = vunpack.c.l.b16 %v108
  %v189 = vunpack.c.l.b16 %v109
  %v190 = vunpack.c.l.b16 %v110
  %v191 = vunpack.c.l.b16 %v111
  %v192 = vunpack.c.l.b16 %v112
  %v193 = vunpack.c.l.b16 %v113
  %v194 = vunpack.c.l.b16 %v114
  %v195 = vunpack.c.l.b16 %v115
  %v196 = vunpack.c.l.b16 %v116
  %v197 = vunpack.c.l.b16 %v117
  %v198 = vunpack.c.l.b16 %v118
  %v199 = vunpack.c.l.b16 %v119
  %v200 = vunpack.c.l.b16 %v120
  %v201 = vpack.c.b16 %v186, %v185
  %v202 = vpack.c.b16 %v188, %v187
  %v203 = vpack.c.b16 %v190, %v189
  %v204 = vpack.c.b16 %v192, %v191
  %v205 = vpack.c.b16 %v194, %v193
  %v206 = vpack.c.b16 %v196, %v195
  %v207 = vpack.c.b16 %v198, %v197
  %v208 = vpack.c.b16 %v200, %v199
  %217 = vmatprep.subr.bf16.mxu0 0
  %218 = vmatpush1.bf16.msra.mxu0 %v201
  %219 = vmatprep.subr.bf16.mxu0 0
  %220 = vmatpush1.bf16.msra.mxu0 %v202
  %221 = vmatprep.subr.bf16.mxu0 0
  %222 = vmatpush1.bf16.msra.mxu0 %v203
  %223 = vmatprep.subr.bf16.mxu0 0
  %224 = vmatpush1.bf16.msra.mxu0 %v204
  %225 = vmatprep.subr.bf16.mxu0 0
  %226 = vmatpush1.bf16.msra.mxu0 %v205
  %227 = vmatprep.subr.bf16.mxu0 0
  %228 = vmatpush1.bf16.msra.mxu0 %v206
  %229 = vmatprep.subr.bf16.mxu0 0
  %230 = vmatpush1.bf16.msra.mxu0 %v207
  %231 = vmatprep.subr.bf16.mxu0 0
  %232 = vmatpush1.bf16.msra.mxu0 %v208
  %233 = vmatprep.subr.bf16.mxu0 0
  %234 = vmatpush1.bf16.msra.mxu0 0
  %235 = vmatprep.subr.bf16.mxu0 0
  %236 = vmatpush1.bf16.msra.mxu0 0
  %237 = vmatprep.subr.bf16.mxu0 0
  %238 = vmatpush1.bf16.msra.mxu0 0
  %239 = vmatprep.subr.bf16.mxu0 0
  %240 = vmatpush1.bf16.msra.mxu0 0
  %241 = vmatprep.subr.bf16.mxu0 0
  %242 = vmatpush1.bf16.msra.mxu0 0
  %243 = vmatprep.subr.bf16.mxu0 0
  %244 = vmatpush1.bf16.msra.mxu0 0
  %245 = vmatprep.subr.bf16.mxu0 0
  %246 = vmatpush1.bf16.msra.mxu0 0
  %247 = vmatprep.subr.bf16.mxu0 0
  %248 = vmatpush1.bf16.msra.mxu0 0
  %249 = vmatprep.mubr.bf16.mxu0 0
  %250 = vmatmul.mubr.bf16.gmra.mrb[0].mxu0 %v153
  %v251 = vpop.f32.mrb[0].mxu0
  %v252 = vadd.f32 0.0, %v251
  %v253 = vpop.f32.mrb[0].mxu0
  %v254 = vpop.f32.mrb[0].mxu0
  %v255 = vadd.f32 0.0, %v254
  %v256 = vpop.f32.mrb[0].mxu0
  %257 = vmatprep.mubr.bf16.mxu0 0
  %258 = vmatmul.mubr.bf16.gmra.mrb[0].mxu0 %v154
  %v259 = vpop.f32.mrb[0].mxu0
  %v260 = vadd.f32 0.0, %v259
  %v261 = vpop.f32.mrb[0].mxu0
  %v262 = vpop.f32.mrb[0].mxu0
  %v263 = vadd.f32 0.0, %v262
  %v264 = vpop.f32.mrb[0].mxu0
  %265 = vmatprep.mubr.bf16.mxu0 0
  %266 = vmatmul.mubr.bf16.gmra.mrb[0].mxu0 %v155
  %v267 = vpop.f32.mrb[0].mxu0
  %v268 = vadd.f32 0.0, %v267
  %v269 = vpop.f32.mrb[0].mxu0
  %v270 = vpop.f32.mrb[0].mxu0
  %v271 = vadd.f32 0.0, %v270
  %v272 = vpop.f32.mrb[0].mxu0
  %273 = vmatprep.mubr.bf16.mxu0 0
  %274 = vmatmul.mubr.bf16.gmra.mrb[0].mxu0 %v156
  %v275 = vpop.f32.mrb[0].mxu0
  %v276 = vadd.f32 0.0, %v275
  %v277 = vpop.f32.mrb[0].mxu0
  %v278 = vpop.f32.mrb[0].mxu0
  %v279 = vadd.f32 0.0, %v278
  %v280 = vpop.f32.mrb[0].mxu0
  %281 = vmatprep.mubr.bf16.mxu0 0
  %282 = vmatmul.mubr.bf16.gmra.mrb[0].mxu0 %v157
  %v283 = vpop.f32.mrb[0].mxu0
  %v284 = vadd.f32 0.0, %v283
  %v285 = vpop.f32.mrb[0].mxu0
  %v286 = vpop.f32.mrb[0].mxu0
  %v287 = vadd.f32 0.0, %v286
  %v288 = vpop.f32.mrb[0].mxu0
  %289 = vmatprep.mubr.bf16.mxu0 0
  %290 = vmatmul.mubr.bf16.gmra.mrb[0].mxu0 %v158
  %v291 = vpop.f32.mrb[0].mxu0
  %v292 = vadd.f32 0.0, %v291
  %v293 = vpop.f32.mrb[0].mxu0
  %v294 = vpop.f32.mrb[0].mxu0
  %v295 = vadd.f32 0.0, %v294
  %v296 = vpop.f32.mrb[0].mxu0
  %297 = vmatprep.mubr.bf16.mxu0 0
  %298 = vmatmul.mubr.bf16.gmra.mrb[0].mxu0 %v159
  %v299 = vpop.f32.mrb[0].mxu0
  %v300 = vadd.f32 0.0, %v299
  %v301 = vpop.f32.mrb[0].mxu0
  %v302 = vpop.f32.mrb[0].mxu0
  %v303 = vadd.f32 0.0, %v302
  %v304 = vpop.f32.mrb[0].mxu0
  %305 = vmatprep.mubr.bf16.mxu0 0
  %306 = vmatmul.mubr.bf16.gmra.mrb[0].mxu0 %v160
  %v307 = vpop.f32.mrb[0].mxu0
  %v308 = vadd.f32 0.0, %v307
  %v309 = vpop.f32.mrb[0].mxu0
  %v310 = vpop.f32.mrb[0].mxu0
  %v311 = vadd.f32 0.0, %v310
  %v312 = vpop.f32.mrb[0].mxu0
  %313 = vdwg.mxu0
  %v330 = vunpack.c.l.b16 %v41
  %v331 = vunpack.c.l.b16 %v42
  %v332 = vunpack.c.l.b16 %v43
  %v333 = vunpack.c.l.b16 %v44
  %v334 = vunpack.c.l.b16 %v45
  %v335 = vunpack.c.l.b16 %v46
  %v336 = vunpack.c.l.b16 %v47
  %v337 = vunpack.c.l.b16 %v48
  %v338 = vunpack.c.l.b16 %v49
  %v339 = vunpack.c.l.b16 %v50
  %v340 = vunpack.c.l.b16 %v51
  %v341 = vunpack.c.l.b16 %v52
  %v342 = vunpack.c.l.b16 %v53
  %v343 = vunpack.c.l.b16 %v54
  %v344 = vunpack.c.l.b16 %v55
  %v345 = vunpack.c.l.b16 %v56
  %v346 = vpack.c.b16 %v331, %v330
  %v347 = vpack.c.b16 %v333, %v332
  %v348 = vpack.c.b16 %v335, %v334
  %v349 = vpack.c.b16 %v337, %v336
  %v350 = vpack.c.b16 %v339, %v338
  %v351 = vpack.c.b16 %v341, %v340
  %v352 = vpack.c.b16 %v343, %v342
  %v353 = vpack.c.b16 %v345, %v344
  %v378 = vunpack.c.l.b16 %v89
  %v379 = vunpack.c.l.b16 %v90
  %v380 = vunpack.c.l.b16 %v91
  %v381 = vunpack.c.l.b16 %v92
  %v382 = vunpack.c.l.b16 %v93
  %v383 = vunpack.c.l.b16 %v94
  %v384 = vunpack.c.l.b16 %v95
  %v385 = vunpack.c.l.b16 %v96
  %v386 = vunpack.c.l.b16 %v97
  %v387 = vunpack.c.l.b16 %v98
  %v388 = vunpack.c.l.b16 %v99
  %v389 = vunpack.c.l.b16 %v100
  %v390 = vunpack.c.l.b16 %v101
  %v391 = vunpack.c.l.b16 %v102
  %v392 = vunpack.c.l.b16 %v103
  %v393 = vunpack.c.l.b16 %v104
  %v394 = vpack.c.b16 %v379, %v378
  %v395 = vpack.c.b16 %v381, %v380
  %v396 = vpack.c.b16 %v383, %v382
  %v397 = vpack.c.b16 %v385, %v384
  %v398 = vpack.c.b16 %v387, %v386
  %v399 = vpack.c.b16 %v389, %v388
  %v400 = vpack.c.b16 %v391, %v390
  %v401 = vpack.c.b16 %v393, %v392
  %410 = vmatprep.subr.bf16.mxu0 0
  %411 = vmatpush1.bf16.msra.mxu0 %v394
  %412 = vmatprep.subr.bf16.mxu0 0
  %413 = vmatpush1.bf16.msra.mxu0 %v395
  %414 = vmatprep.subr.bf16.mxu0 0
  %415 = vmatpush1.bf16.msra.mxu0 %v396
  %416 = vmatprep.subr.bf16.mxu0 0
  %417 = vmatpush1.bf16.msra.mxu0 %v397
  %418 = vmatprep.subr.bf16.mxu0 0
  %419 = vmatpush1.bf16.msra.mxu0 %v398
  %420 = vmatprep.subr.bf16.mxu0 0
  %421 = vmatpush1.bf16.msra.mxu0 %v399
  %422 = vmatprep.subr.bf16.mxu0 0
  %423 = vmatpush1.bf16.msra.mxu0 %v400
  %424 = vmatprep.subr.bf16.mxu0 0
  %425 = vmatpush1.bf16.msra.mxu0 %v401
  %426 = vmatprep.subr.bf16.mxu0 0
  %427 = vmatpush1.bf16.msra.mxu0 0
  %428 = vmatprep.subr.bf16.mxu0 0
  %429 = vmatpush1.bf16.msra.mxu0 0
  %430 = vmatprep.subr.bf16.mxu0 0
  %431 = vmatpush1.bf16.msra.mxu0 0
  %432 = vmatprep.subr.bf16.mxu0 0
  %433 = vmatpush1.bf16.msra.mxu0 0
  %434 = vmatprep.subr.bf16.mxu0 0
  %435 = vmatpush1.bf16.msra.mxu0 0
  %436 = vmatprep.subr.bf16.mxu0 0
  %437 = vmatpush1.bf16.msra.mxu0 0
  %438 = vmatprep.subr.bf16.mxu0 0
  %439 = vmatpush1.bf16.msra.mxu0 0
  %440 = vmatprep.subr.bf16.mxu0 0
  %441 = vmatpush1.bf16.msra.mxu0 0
  %442 = vmatprep.mubr.bf16.mxu0 0
  %443 = vmatmul.mubr.bf16.gmra.mrb[0].mxu0 %v346
  %v444 = vpop.f32.mrb[0].mxu0
  %v445 = vadd.f32 %v252, %v444
  %v446 = vpop.f32.mrb[0].mxu0
  %v447 = vpop.f32.mrb[0].mxu0
  %v448 = vadd.f32 %v255, %v447
  %v449 = vpop.f32.mrb[0].mxu0
  %450 = vmatprep.mubr.bf16.mxu0 0
  %451 = vmatmul.mubr.bf16.gmra.mrb[0].mxu0 %v347
  %v452 = vpop.f32.mrb[0].mxu0
  %v453 = vadd.f32 %v260, %v452
  %v454 = vpop.f32.mrb[0].mxu0
  %v455 = vpop.f32.mrb[0].mxu0
  %v456 = vadd.f32 %v263, %v455
  %v457 = vpop.f32.mrb[0].mxu0
  %458 = vmatprep.mubr.bf16.mxu0 0
  %459 = vmatmul.mubr.bf16.gmra.mrb[0].mxu0 %v348
  %v460 = vpop.f32.mrb[0].mxu0
  %v461 = vadd.f32 %v268, %v460
  %v462 = vpop.f32.mrb[0].mxu0
  %v463 = vpop.f32.mrb[0].mxu0
  %v464 = vadd.f32 %v271, %v463
  %v465 = vpop.f32.mrb[0].mxu0
  %466 = vmatprep.mubr.bf16.mxu0 0
  %467 = vmatmul.mubr.bf16.gmra.mrb[0].mxu0 %v349
  %v468 = vpop.f32.mrb[0].mxu0
  %v469 = vadd.f32 %v276, %v468
  %v470 = vpop.f32.mrb[0].mxu0
  %v471 = vpop.f32.mrb[0].mxu0
  %v472 = vadd.f32 %v279, %v471
  %v473 = vpop.f32.mrb[0].mxu0
  %474 = vmatprep.mubr.bf16.mxu0 0
  %475 = vmatmul.mubr.bf16.gmra.mrb[0].mxu0 %v350
  %v476 = vpop.f32.mrb[0].mxu0
  %v477 = vadd.f32 %v284, %v476
  %v478 = vpop.f32.mrb[0].mxu0
  %v479 = vpop.f32.mrb[0].mxu0
  %v480 = vadd.f32 %v287, %v479
  %v481 = vpop.f32.mrb[0].mxu0
  %482 = vmatprep.mubr.bf16.mxu0 0
  %483 = vmatmul.mubr.bf16.gmra.mrb[0].mxu0 %v351
  %v484 = vpop.f32.mrb[0].mxu0
  %v485 = vadd.f32 %v292, %v484
  %v486 = vpop.f32.mrb[0].mxu0
  %v487 = vpop.f32.mrb[0].mxu0
  %v488 = vadd.f32 %v295, %v487
  %v489 = vpop.f32.mrb[0].mxu0
  %490 = vmatprep.mubr.bf16.mxu0 0
  %491 = vmatmul.mubr.bf16.gmra.mrb[0].mxu0 %v352
  %v492 = vpop.f32.mrb[0].mxu0
  %v493 = vadd.f32 %v300, %v492
  %v494 = vpop.f32.mrb[0].mxu0
  %v495 = vpop.f32.mrb[0].mxu0
  %v496 = vadd.f32 %v303, %v495
  %v497 = vpop.f32.mrb[0].mxu0
  %498 = vmatprep.mubr.bf16.mxu0 0
  %499 = vmatmul.mubr.bf16.gmra.mrb[0].mxu0 %v353
  %v500 = vpop.f32.mrb[0].mxu0
  %v501 = vadd.f32 %v308, %v500
  %v502 = vpop.f32.mrb[0].mxu0
  %v503 = vpop.f32.mrb[0].mxu0
  %v504 = vadd.f32 %v311, %v503
  %v505 = vpop.f32.mrb[0].mxu0
  %506 = vdwg.mxu0
  %508 = vset.pattern.permute.xlu0 0
  %509 = vperm.xlu0 %508, %v73
  %v510 = vpop.permute.xlu0 %509
  %513 = vset.pattern.permute.xlu0 0
  %514 = vperm.xlu0 %513, %v74
  %v515 = vpop.permute.xlu0 %514
  %518 = vset.pattern.permute.xlu0 0
  %519 = vperm.xlu0 %518, %v75
  %v520 = vpop.permute.xlu0 %519
  %523 = vset.pattern.permute.xlu0 0
  %524 = vperm.xlu0 %523, %v76
  %v525 = vpop.permute.xlu0 %524
  %528 = vset.pattern.permute.xlu0 0
  %529 = vperm.xlu0 %528, %v77
  %v530 = vpop.permute.xlu0 %529
  %533 = vset.pattern.permute.xlu0 0
  %534 = vperm.xlu0 %533, %v78
  %v535 = vpop.permute.xlu0 %534
  %538 = vset.pattern.permute.xlu0 0
  %539 = vperm.xlu0 %538, %v79
  %v540 = vpop.permute.xlu0 %539
  %543 = vset.pattern.permute.xlu0 0
  %544 = vperm.xlu0 %543, %v80
  %v545 = vpop.permute.xlu0 %544
  %548 = vset.pattern.permute.xlu0 0
  %549 = vperm.xlu0 %548, %v81
  %v550 = vpop.permute.xlu0 %549
  %553 = vset.pattern.permute.xlu0 0
  %554 = vperm.xlu0 %553, %v82
  %v555 = vpop.permute.xlu0 %554
  %558 = vset.pattern.permute.xlu0 0
  %559 = vperm.xlu0 %558, %v83
  %v560 = vpop.permute.xlu0 %559
  %563 = vset.pattern.permute.xlu0 0
  %564 = vperm.xlu0 %563, %v84
  %v565 = vpop.permute.xlu0 %564
  %568 = vset.pattern.permute.xlu0 0
  %569 = vperm.xlu0 %568, %v85
  %v570 = vpop.permute.xlu0 %569
  %573 = vset.pattern.permute.xlu0 0
  %574 = vperm.xlu0 %573, %v86
  %v575 = vpop.permute.xlu0 %574
  %578 = vset.pattern.permute.xlu0 0
  %579 = vperm.xlu0 %578, %v87
  %v580 = vpop.permute.xlu0 %579
  %583 = vset.pattern.permute.xlu0 0
  %584 = vperm.xlu0 %583, %v88
  %v585 = vpop.permute.xlu0 %584
  %v587 = vadd.f32 %v445, %v510
  %v588 = vadd.f32 %v448, %v515
  %v589 = vadd.f32 %v453, %v520
  %v590 = vadd.f32 %v456, %v525
  %v591 = vadd.f32 %v461, %v530
  %v592 = vadd.f32 %v464, %v535
  %v593 = vadd.f32 %v469, %v540
  %v594 = vadd.f32 %v472, %v545
  %v595 = vadd.f32 %v477, %v550
  %v596 = vadd.f32 %v480, %v555
  %v597 = vadd.f32 %v485, %v560
  %v598 = vadd.f32 %v488, %v565
  %v599 = vadd.f32 %v493, %v570
  %v600 = vadd.f32 %v496, %v575
  %v601 = vadd.f32 %v501, %v580
  %v602 = vadd.f32 %v504, %v585
  %v603 = vmax.f32 %v587, 0.0
  %v604 = vmax.f32 %v588, 0.0
  %v605 = vmax.f32 %v589, 0.0
  %v606 = vmax.f32 %v590, 0.0
  %v607 = vmax.f32 %v591, 0.0
  %v608 = vmax.f32 %v592, 0.0
  %v609 = vmax.f32 %v593, 0.0
  %v610 = vmax.f32 %v594, 0.0
  %v611 = vmax.f32 %v595, 0.0
  %v612 = vmax.f32 %v596, 0.0
  %v613 = vmax.f32 %v597, 0.0
  %v614 = vmax.f32 %v598, 0.0
  %v615 = vmax.f32 %v599, 0.0
  %v616 = vmax.f32 %v600, 0.0
  %v617 = vmax.f32 %v601, 0.0
  %v618 = vmax.f32 %v602, 0.0
  %v619 = vld [vmem:[%s5] sm:$0xf]
  %v620 = vld [vmem:[%s5 + $0x4] sm:$0xf]
  %v621 = vld [vmem:[%s5 + $0x8] sm:$0xf]
  %v622 = vld [vmem:[%s5 + $0xc] sm:$0xf]
  %v623 = vld [vmem:[%s5 + $0x10] sm:$0xf]
  %v624 = vld [vmem:[%s5 + $0x14] sm:$0xf]
  %v625 = vld [vmem:[%s5 + $0x18] sm:$0xf]
  %v626 = vld [vmem:[%s5 + $0x1c] sm:$0xf]
  %v627 = vld [vmem:[%s6] sm:$0xff]
  %v628 = vld [vmem:[%s6 + $0x8] sm:$0xff]
  %v629 = vld [vmem:[%s6 + $0x10] sm:$0xff]
  %v630 = vld [vmem:[%s6 + $0x18] sm:$0xff]
  %v631 = vld [vmem:[%s6 + $0x20] sm:$0xff]
  %v632 = vld [vmem:[%s6 + $0x28] sm:$0xff]
  %v633 = vld [vmem:[%s6 + $0x30] sm:$0xff]
  %v634 = vld [vmem:[%s6 + $0x38] sm:$0xff]
  %v635 = vpack.c.bf16 %v604, %v603
  %v636 = vpack.c.bf16 %v606, %v605
  %v637 = vpack.c.bf16 %v608, %v607
  %v638 = vpack.c.bf16 %v610, %v609
  %v639 = vpack.c.bf16 %v612, %v611
  %v640 = vpack.c.bf16 %v614, %v613
  %v641 = vpack.c.bf16 %v616, %v615
  %v642 = vpack.c.bf16 %v618, %v617
  %644 = vset.pattern.permute.xlu0 0
  %645 = vperm.xlu0 %644, %v627
  %v646 = vpop.permute.xlu0 %645
  %649 = vset.pattern.permute.xlu0 0
  %650 = vperm.xlu0 %649, %v628
  %v651 = vpop.permute.xlu0 %650
  %654 = vset.pattern.permute.xlu0 0
  %655 = vperm.xlu0 %654, %v629
  %v656 = vpop.permute.xlu0 %655
  %659 = vset.pattern.permute.xlu0 0
  %660 = vperm.xlu0 %659, %v630
  %v661 = vpop.permute.xlu0 %660
  %664 = vset.pattern.permute.xlu0 0
  %665 = vperm.xlu0 %664, %v631
  %v666 = vpop.permute.xlu0 %665
  %669 = vset.pattern.permute.xlu0 0
  %670 = vperm.xlu0 %669, %v632
  %v671 = vpop.permute.xlu0 %670
  %674 = vset.pattern.permute.xlu0 0
  %675 = vperm.xlu0 %674, %v633
  %v676 = vpop.permute.xlu0 %675
  %679 = vset.pattern.permute.xlu0 0
  %680 = vperm.xlu0 %679, %v634
  %v681 = vpop.permute.xlu0 %680
  %v691 = vunpack.c.l.b16 %v619
  %v692 = vunpack.c.l.b16 %v620
  %v693 = vunpack.c.l.b16 %v621
  %v694 = vunpack.c.l.b16 %v622
  %v695 = vunpack.c.l.b16 %v623
  %v696 = vunpack.c.l.b16 %v624
  %v697 = vunpack.c.l.b16 %v625
  %v698 = vunpack.c.l.b16 %v626
  %v699 = vpack.c.b16 %v692, %v691
  %v700 = vpack.c.b16 %v694, %v693
  %v701 = vpack.c.b16 %v696, %v695
  %v702 = vpack.c.b16 %v698, %v697
  %707 = vmatprep.subr.bf16.mxu0 0
  %708 = vmatpush1.bf16.msra.mxu0 %v635
  %709 = vmatprep.subr.bf16.mxu0 0
  %710 = vmatpush1.bf16.msra.mxu0 %v636
  %711 = vmatprep.subr.bf16.mxu0 0
  %712 = vmatpush1.bf16.msra.mxu0 %v637
  %713 = vmatprep.subr.bf16.mxu0 0
  %714 = vmatpush1.bf16.msra.mxu0 %v638
  %715 = vmatprep.subr.bf16.mxu0 0
  %716 = vmatpush1.bf16.msra.mxu0 %v639
  %717 = vmatprep.subr.bf16.mxu0 0
  %718 = vmatpush1.bf16.msra.mxu0 %v640
  %719 = vmatprep.subr.bf16.mxu0 0
  %720 = vmatpush1.bf16.msra.mxu0 %v641
  %721 = vmatprep.subr.bf16.mxu0 0
  %722 = vmatpush1.bf16.msra.mxu0 %v642
  %723 = vmatprep.subr.bf16.mxu0 0
  %724 = vmatpush1.bf16.msra.mxu0 0
  %725 = vmatprep.subr.bf16.mxu0 0
  %726 = vmatpush1.bf16.msra.mxu0 0
  %727 = vmatprep.subr.bf16.mxu0 0
  %728 = vmatpush1.bf16.msra.mxu0 0
  %729 = vmatprep.subr.bf16.mxu0 0
  %730 = vmatpush1.bf16.msra.mxu0 0
  %731 = vmatprep.subr.bf16.mxu0 0
  %732 = vmatpush1.bf16.msra.mxu0 0
  %733 = vmatprep.subr.bf16.mxu0 0
  %734 = vmatpush1.bf16.msra.mxu0 0
  %735 = vmatprep.subr.bf16.mxu0 0
  %736 = vmatpush1.bf16.msra.mxu0 0
  %737 = vmatprep.subr.bf16.mxu0 0
  %738 = vmatpush1.bf16.msra.mxu0 0
  %739 = vmatprep.mubr.bf16.mxu0 0
  %740 = vmatmul.mubr.bf16.gmra.mrb[0].mxu0 %v699
  %v741 = vpop.f32.mrb[0].mxu0
  %v742 = vadd.f32 %v646, %v741
  %v743 = vpop.f32.mrb[0].mxu0
  %v744 = vpop.f32.mrb[0].mxu0
  %v745 = vadd.f32 %v651, %v744
  %v746 = vpop.f32.mrb[0].mxu0
  %747 = vmatprep.mubr.bf16.mxu0 0
  %748 = vmatmul.mubr.bf16.gmra.mrb[0].mxu0 %v700
  %v749 = vpop.f32.mrb[0].mxu0
  %v750 = vadd.f32 %v656, %v749
  %v751 = vpop.f32.mrb[0].mxu0
  %v752 = vpop.f32.mrb[0].mxu0
  %v753 = vadd.f32 %v661, %v752
  %v754 = vpop.f32.mrb[0].mxu0
  %755 = vmatprep.mubr.bf16.mxu0 0
  %756 = vmatmul.mubr.bf16.gmra.mrb[0].mxu0 %v701
  %v757 = vpop.f32.mrb[0].mxu0
  %v758 = vadd.f32 %v666, %v757
  %v759 = vpop.f32.mrb[0].mxu0
  %v760 = vpop.f32.mrb[0].mxu0
  %v761 = vadd.f32 %v671, %v760
  %v762 = vpop.f32.mrb[0].mxu0
  %763 = vmatprep.mubr.bf16.mxu0 0
  %764 = vmatmul.mubr.bf16.gmra.mrb[0].mxu0 %v702
  %v765 = vpop.f32.mrb[0].mxu0
  %v766 = vadd.f32 %v676, %v765
  %v767 = vpop.f32.mrb[0].mxu0
  %v768 = vpop.f32.mrb[0].mxu0
  %v769 = vadd.f32 %v681, %v768
  %v770 = vpop.f32.mrb[0].mxu0
  %771 = vdwg.mxu0
  %v772 = vmax.f32 %v742, 0.0
  %v773 = vmax.f32 %v745, 0.0
  %v774 = vmax.f32 %v750, 0.0
  %v775 = vmax.f32 %v753, 0.0
  %v776 = vmax.f32 %v758, 0.0
  %v777 = vmax.f32 %v761, 0.0
  %v778 = vmax.f32 %v766, 0.0
  %v779 = vmax.f32 %v769, 0.0
  %v780 = vld [vmem:[%s7] sm:$0xf]
  %v781 = vld [vmem:[%s7 + $0x4] sm:$0xf]
  %v782 = vld [vmem:[%s7 + $0x8] sm:$0xf]
  %v783 = vld [vmem:[%s7 + $0xc] sm:$0xf]
  %v784 = vld [vmem:[%s8] sm:$0xff]
  %v785 = vld [vmem:[%s8 + $0x8] sm:$0xff]
  %v786 = vld [vmem:[%s8 + $0x10] sm:$0xff]
  %v787 = vld [vmem:[%s8 + $0x18] sm:$0xff]
  %v788 = vpack.c.bf16 %v773, %v772
  %v789 = vpack.c.bf16 %v775, %v774
  %v790 = vpack.c.bf16 %v777, %v776
  %v791 = vpack.c.bf16 %v779, %v778
  %793 = vset.pattern.permute.xlu0 0
  %794 = vperm.xlu0 %793, %v784
  %v795 = vpop.permute.xlu0 %794
  %798 = vset.pattern.permute.xlu0 0
  %799 = vperm.xlu0 %798, %v785
  %v800 = vpop.permute.xlu0 %799
  %803 = vset.pattern.permute.xlu0 0
  %804 = vperm.xlu0 %803, %v786
  %v805 = vpop.permute.xlu0 %804
  %808 = vset.pattern.permute.xlu0 0
  %809 = vperm.xlu0 %808, %v787
  %v810 = vpop.permute.xlu0 %809
  %v816 = vunpack.c.l.b16 %v780
  %v817 = vunpack.c.l.b16 %v781
  %v818 = vunpack.c.l.b16 %v782
  %v819 = vunpack.c.l.b16 %v783
  %v820 = vpack.c.b16 %v817, %v816
  %v821 = vpack.c.b16 %v819, %v818
  %vm822 = vcmask 523264
  %v824 = vsel %vm822, %v820, 0
  %v827 = vsel %vm822, %v821, 0
  %829 = vmatprep.subr.bf16.mxu0 0
  %830 = vmatpush1.bf16.msra.mxu0 %v788
  %831 = vmatprep.subr.bf16.mxu0 0
  %832 = vmatpush1.bf16.msra.mxu0 %v789
  %833 = vmatprep.subr.bf16.mxu0 0
  %834 = vmatpush1.bf16.msra.mxu0 %v790
  %835 = vmatprep.subr.bf16.mxu0 0
  %836 = vmatpush1.bf16.msra.mxu0 %v791
  %837 = vmatprep.subr.bf16.mxu0 0
  %838 = vmatpush1.bf16.msra.mxu0 0
  %839 = vmatprep.subr.bf16.mxu0 0
  %840 = vmatpush1.bf16.msra.mxu0 0
  %841 = vmatprep.subr.bf16.mxu0 0
  %842 = vmatpush1.bf16.msra.mxu0 0
  %843 = vmatprep.subr.bf16.mxu0 0
  %844 = vmatpush1.bf16.msra.mxu0 0
  %845 = vmatprep.subr.bf16.mxu0 0
  %846 = vmatpush1.bf16.msra.mxu0 0
  %847 = vmatprep.subr.bf16.mxu0 0
  %848 = vmatpush1.bf16.msra.mxu0 0
  %849 = vmatprep.subr.bf16.mxu0 0
  %850 = vmatpush1.bf16.msra.mxu0 0
  %851 = vmatprep.subr.bf16.mxu0 0
  %852 = vmatpush1.bf16.msra.mxu0 0
  %853 = vmatprep.subr.bf16.mxu0 0
  %854 = vmatpush1.bf16.msra.mxu0 0
  %855 = vmatprep.subr.bf16.mxu0 0
  %856 = vmatpush1.bf16.msra.mxu0 0
  %857 = vmatprep.subr.bf16.mxu0 0
  %858 = vmatpush1.bf16.msra.mxu0 0
  %859 = vmatprep.subr.bf16.mxu0 0
  %860 = vmatpush1.bf16.msra.mxu0 0
  %861 = vmatprep.mubr.bf16.mxu0 0
  %862 = vmatmul.mubr.bf16.gmra.mrb[0].mxu0 %v824
  %v863 = vpop.f32.mrb[0].mxu0
  %v864 = vadd.f32 %v795, %v863
  %v865 = vpop.f32.mrb[0].mxu0
  %v866 = vpop.f32.mrb[0].mxu0
  %v867 = vadd.f32 %v800, %v866
  %v868 = vpop.f32.mrb[0].mxu0
  %869 = vmatprep.mubr.bf16.mxu0 0
  %870 = vmatmul.mubr.bf16.gmra.mrb[0].mxu0 %v827
  %v871 = vpop.f32.mrb[0].mxu0
  %v872 = vadd.f32 %v805, %v871
  %v873 = vpop.f32.mrb[0].mxu0
  %v874 = vpop.f32.mrb[0].mxu0
  %v875 = vadd.f32 %v810, %v874
  %v876 = vpop.f32.mrb[0].mxu0
  %877 = vdwg.mxu0
  %v878 = vmax.f32 %v864, 0.0
  %v879 = vmax.f32 %v867, 0.0
  %v880 = vmax.f32 %v872, 0.0
  %v881 = vmax.f32 %v875, 0.0
  %v882 = vld [vmem:[%s9] sm:$0xff]
  %v883 = vld [vmem:[%s9 + $0x8] sm:$0xff]
  %v884 = vld [vmem:[%s9 + $0x10] sm:$0xff]
  %v885 = vld [vmem:[%s9 + $0x18] sm:$0xff]
  %v886 = vld [vmem:[#allocation2] sm:$0x1]
  %888 = vset.pattern.permute.xlu0 0
  %889 = vperm.xlu0 %888, %v882
  %v890 = vpop.permute.xlu0 %889
  %893 = vset.pattern.permute.xlu0 0
  %894 = vperm.xlu0 %893, %v883
  %v895 = vpop.permute.xlu0 %894
  %898 = vset.pattern.permute.xlu0 0
  %899 = vperm.xlu0 %898, %v884
  %v900 = vpop.permute.xlu0 %899
  %903 = vset.pattern.permute.xlu0 0
  %904 = vperm.xlu0 %903, %v885
  %v905 = vpop.permute.xlu0 %904
  %v907 = vmul.f32 %v878, %v890
  %v908 = vmul.f32 %v879, %v895
  %v909 = vmul.f32 %v880, %v900
  %v910 = vmul.f32 %v881, %v905
  %v911 = vadd.f32 %v907, %v908
  %v912 = vadd.f32 %v911, %v909
  %v913 = vadd.f32 %v912, %v910
  %v914 = vrot.slane %v913, 4
  %v915 = vadd.f32 %v913, %v914
  %v916 = vrot.slane %v915, 2
  %v917 = vadd.f32 %v915, %v916
  %v918 = vrot.slane %v917, 1
  %v919 = vadd.f32 %v917, %v918
  %921 = vset.pattern.permute.xlu0 0
  %922 = vperm.xlu0 %921, %v886
  %v923 = vpop.permute.xlu0 %922
  %v925 = vlaneseq
  %v926 = vshrl.u32 %v925, 7
  %v927 = vsub.s32 0, %v926
  %v928 = vrot.slane %v923, %v927
  %v929 = vadd.f32 %v919, %v928
  %v930 = vsub.f32 0.0, %v929
  %v931 = vmul.f32 %v930, 1.442695
  %v932 = vpow.pop %v931
  %v933 = vadd.f32 %v932, 1.0
  %v934 = vrcp.pop %v933
  %v935 = vmax.f32 %v934, 0.0
  %v936 = vmin.f32 %v935, 1.0
  %937 = vst [vmem:[%s11] sm:$0x1] %v936
  // Predicated region
  $region46: #{mlp_forward.1} parent=0 // pred_check
    _
  $region47: #{mlp_forward.1} parent=0 // pred_check_branch
    %939 = sbr.rel (0) target = $region49
  $region48: #{mlp_forward.1} parent=0 // pred_region
    _
  $region49: #{mlp_forward.1} parent=0 // pred_fallthru
    _
  // Predicated region
  $region50: #{mlp_forward.1} parent=0 // pred_check
    _
  $region51: #{mlp_forward.1} parent=0 // pred_check_branch
    %941 = sbr.rel (0) target = $region53
  $region52: #{mlp_forward.1} parent=0 // pred_region
    _
  $region53: #{mlp_forward.1} parent=0 // pred_fallthru
    _

</llo_original>
